<compile_context>
chip_gen: v7x
topology: tpu7x:2x2x1
jax: 0.10.0
libtpu: 0.0.40
codegen_flags: <defaults>
</compile_context>

<pallas_src>
import numpy as np
import jax
import jax.numpy as jnp
from jax.experimental import pallas as pl
from jax.experimental.pallas import tpu as pltpu


def _border_src(size, lo, hi, mode):
    """Source index (in [0, size)) for each padded border position.
    Returns (low_list, high_list); -1 means zero-fill (constant mode)."""
    def src(p):
        if 0 <= p < size:
            return p
        if mode == "reflect":
            return -p if p < 0 else 2 * (size - 1) - p
        if mode == "replicate":
            return 0 if p < 0 else size - 1
        return -1  # constant
    return ([src(p) for p in range(-lo, 0)],
            [src(p) for p in range(size, size + hi)])


def _make_kernel(B, h, w, Ho, Wo, row_top, row_bot, col_top, col_bot,
                 need_overwrite, rs, cs):
    def kernel(x_ref, o_ref):
        x = x_ref[...]                                      # (B, h, w)
        dt = o_ref.dtype

        def border_rows(srcs):
            if not srcs:
                return []
            if min(srcs) < 0:                               # constant: one zero slab
                return [jnp.zeros((B, len(srcs), w), dt)]
            return [x[:, s:s + 1, :] for s in srcs]

        def border_cols(srcs, base):
            if not srcs:
                return []
            if min(srcs) < 0:                               # constant: one zero slab
                return [jnp.zeros((B, Ho, len(srcs)), dt)]
            return [base[:, :, s:s + 1] for s in srcs]

        # 1) Height padding: stack border rows around x (sublane-axis concat).
        rp = border_rows(row_top) + [x] + border_rows(row_bot)
        y_rows = rp[0] if len(rp) == 1 else jnp.concatenate(rp, axis=1)   # (B, Ho, w)

        # 2) Width padding: border columns read from the row-padded slab so the
        #    corners are correct (separable == F.pad 2-D reflect/replicate).
        cp = border_cols(col_top, y_rows) + [y_rows] + border_cols(col_bot, y_rows)
        y = cp[0] if len(cp) == 1 else jnp.concatenate(cp, axis=2)        # (B, Ho, Wo)

        # 3) One dense store for the whole padded block.
        o_ref[...] = y

        # 4) Exact module semantics: final in-place overwrite with x.  Skipped
        #    at trace time when it coincides with the pad interior (no-op).
        if need_overwrite:
            o_ref[:, rs:rs + h, cs:cs + w] = x

    return kernel


def padding2d_pallas(x, padding=(4, 4), pad_type="reflect", offset_left=True):
    sh, sw = padding
    n, c, h, w = x.shape
    h1, h2 = sh // 2, sh - sh // 2
    w1, w2 = sw // 2, sw - sw // 2
    # F.pad(x, (h1, h2, w1, w2)): width padded by (h1, h2), height by (w1, w2)
    Ho, Wo = h + w1 + w2, w + h1 + h2

    stype = None
    for t in ("constant", "reflect", "replicate"):
        if t in pad_type:
            stype = t
    if stype is None:
        raise NotImplementedError(f"pad_type {pad_type!r} not supported")
    if stype == "reflect":
        assert w1 < h and w2 < h and h1 < w and h2 < w, \
            "reflect padding must be smaller than the padded dimension"

    row_top, row_bot = _border_src(h, w1, w2, stype)      # height borders
    col_top, col_bot = _border_src(w, h1, h2, stype)      # width borders

    if offset_left:
        rs, cs = h1, w1                                    # y[:, :, h1:h1+h, w1:w1+w] = x
    else:
        rs, cs = Ho - h2 - h, Wo - w2 - w                  # y[:, :, -h2-h:-h2, -w2-w:-w2] = x
    assert 0 <= rs and rs + h <= Ho and 0 <= cs and cs + w <= Wo
    need_overwrite = (rs, cs) != (w1, h1)                  # no-op when it hits the pad interior

    NC = n * c
    x3 = x.reshape(NC, h, w)

    # Batch many images per grid step so each DMA is large; cap the per-step
    # footprint (double-buffered I/O + in-register assembly temporaries) so it
    # stays comfortably inside VMEM on all chips (v5e/v6e/v7x).
    itemsize = jnp.dtype(x.dtype).itemsize
    per_img = (2 * h * w + 3 * Ho * Wo + Ho * w) * itemsize
    B = int(max(1, min(NC, 256, (8 << 20) // max(per_img, 1))))
    grid = (pl.cdiv(NC, B),)

    kernel = _make_kernel(B, h, w, Ho, Wo, row_top, row_bot, col_top, col_bot,
                          need_overwrite, rs, cs)

    out = pl.pallas_call(
        kernel,
        out_shape=jax.ShapeDtypeStruct((NC, Ho, Wo), x.dtype),
        grid_spec=pltpu.PrefetchScalarGridSpec(
            num_scalar_prefetch=0,
            grid=grid,
            in_specs=[pl.BlockSpec((B, h, w), lambda b: (b, 0, 0))],
            out_specs=pl.BlockSpec((B, Ho, Wo), lambda b: (b, 0, 0)),
        ),
        compiler_params=pltpu.CompilerParams(
            dimension_semantics=("parallel",),   # N*C axis -> both TCs on v7x
            vmem_limit_bytes=32 << 20,
        ),
    )(x3)

    return out.reshape(n, c, Ho, Wo)


def padding2d_ref(x, padding, pad_type, offset_left):
    """Pure-JAX reference reproducing the PyTorch forward."""
    sh, sw = padding
    n, c, h, w = x.shape
    h1, h2 = sh // 2, sh - sh // 2
    w1, w2 = sw // 2, sw - sw // 2
    mode = None
    for t, m in (("constant", "constant"), ("reflect", "reflect"), ("replicate", "edge")):
        if t in pad_type:
            mode = m
    y = jnp.pad(x, ((0, 0), (0, 0), (w1, w2), (h1, h2)), mode=mode)
    if offset_left:
        y = y.at[:, :, h1:h1 + h, w1:w1 + w].set(x)
    else:
        y = y.at[:, :, -h2 - h:-h2, -w2 - w:-w2].set(x)
    return y


if __name__ == "__main__":
    key = jax.random.PRNGKey(0)
    x = jax.random.normal(key, (2, 4, 16, 16), dtype=jnp.float32)
    x_rect = jax.random.normal(key, (2, 3, 12, 20), dtype=jnp.float32)

    configs = [
        (x, (4, 4), "reflect", True),        # symmetric pad: overwrite is a no-op
        (x, (3, 5), "constant", False),      # asymmetric: exercises the overwrite branch
        (x, (2, 2), "replicate", False),     # symmetric: overwrite is a no-op
        (x, (3, 5), "replicate", True),      # asymmetric + offset_left overwrite
        (x_rect, (4, 6), "reflect", True),   # rectangular H != W
    ]
    for xi, padding, pad_type, offset_left in configs:
        y = jax.block_until_ready(padding2d_pallas(xi, padding, pad_type, offset_left))
        y_ref = padding2d_ref(xi, padding, pad_type, offset_left)
        np.testing.assert_allclose(np.asarray(y), np.asarray(y_ref), rtol=0, atol=0)

    print("KERNEL_OK")
</pallas_src>

<mosaic_0001>
module attributes {stable_mosaic.version = 11 : i64} {
  func.func @kernel(%arg0: i32, %arg1: memref<8x16x16xf32, #tpu.memory_space<vmem>>, %arg2: memref<8x20x20xf32, #tpu.memory_space<vmem>>) attributes {dimension_semantics = [#tpu.dimension_semantics<parallel>], iteration_bounds = array<i64: 1>, scalar_prefetch = 0 : i64, scratch_operands = 0 : i64, tpu.core_type = #tpu.core_type<tc>, window_params = [{transform_indices = @transform_0, window_bounds = array<i64: 8, 16, 16>}, {transform_indices = @transform_1, window_bounds = array<i64: 8, 20, 20>}]} {
    %c0 = arith.constant 0 : index
    %c0_0 = arith.constant 0 : index
    %c0_1 = arith.constant 0 : index
    %0 = vector.load %arg1[%c0, %c0_0, %c0_1] : memref<8x16x16xf32, #tpu.memory_space<vmem>>, vector<8x16x16xf32>
    %1 = vector.extract_strided_slice %0 {offsets = [0, 2, 0], sizes = [8, 1, 16], strides = [1, 1, 1]} : vector<8x16x16xf32> to vector<8x1x16xf32>
    %2 = vector.extract_strided_slice %0 {offsets = [0, 1, 0], sizes = [8, 1, 16], strides = [1, 1, 1]} : vector<8x16x16xf32> to vector<8x1x16xf32>
    %3 = vector.extract_strided_slice %0 {offsets = [0, 14, 0], sizes = [8, 1, 16], strides = [1, 1, 1]} : vector<8x16x16xf32> to vector<8x1x16xf32>
    %4 = vector.extract_strided_slice %0 {offsets = [0, 13, 0], sizes = [8, 1, 16], strides = [1, 1, 1]} : vector<8x16x16xf32> to vector<8x1x16xf32>
    %5 = tpu.concatenate %1, %2, %0, %3, %4 in 1 : vector<8x1x16xf32>, vector<8x1x16xf32>, vector<8x16x16xf32>, vector<8x1x16xf32>, vector<8x1x16xf32> -> vector<8x20x16xf32>
    %6 = vector.extract_strided_slice %5 {offsets = [0, 0, 2], sizes = [8, 20, 1], strides = [1, 1, 1]} : vector<8x20x16xf32> to vector<8x20x1xf32>
    %7 = vector.extract_strided_slice %5 {offsets = [0, 0, 1], sizes = [8, 20, 1], strides = [1, 1, 1]} : vector<8x20x16xf32> to vector<8x20x1xf32>
    %8 = vector.extract_strided_slice %5 {offsets = [0, 0, 14], sizes = [8, 20, 1], strides = [1, 1, 1]} : vector<8x20x16xf32> to vector<8x20x1xf32>
    %9 = vector.extract_strided_slice %5 {offsets = [0, 0, 13], sizes = [8, 20, 1], strides = [1, 1, 1]} : vector<8x20x16xf32> to vector<8x20x1xf32>
    %10 = tpu.concatenate %6, %7, %5, %8, %9 in 2 : vector<8x20x1xf32>, vector<8x20x1xf32>, vector<8x20x16xf32>, vector<8x20x1xf32>, vector<8x20x1xf32> -> vector<8x20x20xf32>
    %c0_2 = arith.constant 0 : index
    %c0_3 = arith.constant 0 : index
    %c0_4 = arith.constant 0 : index
    %11 = vector.load %arg2[%c0_2, %c0_3, %c0_4] : memref<8x20x20xf32, #tpu.memory_space<vmem>>, vector<8x20x20xf32>
    tpu.vector_store %arg2[%c0_2, %c0_3, %c0_4], %10 {strides = array<i32>} : memref<8x20x20xf32, #tpu.memory_space<vmem>>, vector<8x20x20xf32>,
    return
  }
  func.func @transform_0(%arg0: i32) -> (i32, i32, i32) {
    %c0_i32 = arith.constant 0 : i32
    %c0_i32_0 = arith.constant 0 : i32
    %c0_i32_1 = arith.constant 0 : i32
    return %arg0, %c0_i32, %c0_i32_0 : i32, i32, i32
  }
  func.func @transform_1(%arg0: i32) -> (i32, i32, i32) {
    %c0_i32 = arith.constant 0 : i32
    %c0_i32_0 = arith.constant 0 : i32
    %c0_i32_1 = arith.constant 0 : i32
    return %arg0, %c0_i32, %c0_i32_0 : i32, i32, i32
  }
}

</mosaic_0001>

<llo_original>
// kernel: tpu_custom_call.1
$region0: #{tpu_custom_call.1}
  #allocation0 [shape = 'u32[]', space=smem, size = 0x4, offset = 0x4, fixed_abs, tag = 'smem constant byte address 0x4 - core index']
  #allocation1 [shape = 'u32[144,128]{1,0:T(1,128)}', space=vmem, size = 0x12000, scoped, tag = 'internal scratch']
  %s0 = inlined_call_operand.hbm [shape: f32[8,16,16], index: 0, kind: input, shape index: {}]
  %s1 = inlined_call_operand.vmem [shape: f32[8,20,20], index: 1, kind: output, shape index: {}]
  %s2 = sld [smem:[#allocation0]]
  $region18: #{tpu_custom_call.1} parent=0
    _
  %s4 = ssub.s32 1, %s2
  %s5 = scalar_select 0, %s4, %s2
  $region1: #{tpu_custom_call.1} parent=0
    #allocation2 [shape = 'u8[65536]{0}', space=vmem, size = 0x10000, scoped, tag = 'input window, operand 0, single buffered']
    #allocation3 [shape = 's32[1]{0}', space=sflag, size = 0x4, scoped, tag = 'scoped memory for tpu_custom_call.1']
    %6 = vsyncpa [#allocation3], 0
    // Predicated region
    $region2: #{tpu_custom_call.1} parent=1 // pred_check
      _
    $region3: #{tpu_custom_call.1} parent=1 // pred_check_branch
      %8 = sbr.rel (0) target = $region5
    $region4: #{tpu_custom_call.1} parent=1 // pred_region
      %s10 = ssub.s32 2048, 2048
      %11 = vsyncadd [#allocation3], %s10
      %s12 = sshll.u32 [#allocation2], 4
      %s13 = int_to_ptr.vmem [resolvable:$true] %s12
      %18 = dma.hbm_to_vmem [thread:$0]  %s0, 2048, %s13, [#allocation3], 128, 128, 8
    $region5: #{tpu_custom_call.1} parent=1 // pred_fallthru
      _
    // Predicated region
    $region6: #{tpu_custom_call.1} parent=1 // pred_check
      _
    $region7: #{tpu_custom_call.1} parent=1 // pred_check_branch
      %20 = sbr.rel (0) target = $region9
    $region8: #{tpu_custom_call.1} parent=1 // pred_region
      %21 = dma.done [#allocation3], 2048
    $region9: #{tpu_custom_call.1} parent=1 // pred_fallthru
      _
    %v22 = vld [vmem:[#allocation2] sm:$0xff]
    %v23 = vld [vmem:[#allocation2 + $0x8] sm:$0xff]
    %v24 = vld [vmem:[#allocation2 + $0x10] sm:$0xff]
    %v25 = vld [vmem:[#allocation2 + $0x18] sm:$0xff]
    %v26 = vld [vmem:[#allocation2 + $0x20] sm:$0xff]
    %v27 = vld [vmem:[#allocation2 + $0x28] sm:$0xff]
    %v28 = vld [vmem:[#allocation2 + $0x30] sm:$0xff]
    %v29 = vld [vmem:[#allocation2 + $0x38] sm:$0xff]
    %v30 = vld [vmem:[#allocation2 + $0x40] sm:$0xff]
    %v31 = vld [vmem:[#allocation2 + $0x48] sm:$0xff]
    %v32 = vld [vmem:[#allocation2 + $0x50] sm:$0xff]
    %v33 = vld [vmem:[#allocation2 + $0x58] sm:$0xff]
    %v34 = vld [vmem:[#allocation2 + $0x60] sm:$0xff]
    %v35 = vld [vmem:[#allocation2 + $0x68] sm:$0xff]
    %v36 = vld [vmem:[#allocation2 + $0x70] sm:$0xff]
    %v37 = vld [vmem:[#allocation2 + $0x78] sm:$0xff]
    %v46 = vrot.slane %v22, 2
    %v47 = vrot.slane %v24, 2
    %v48 = vrot.slane %v26, 2
    %v49 = vrot.slane %v28, 2
    %v50 = vrot.slane %v30, 2
    %v51 = vrot.slane %v32, 2
    %v52 = vrot.slane %v34, 2
    %v53 = vrot.slane %v36, 2
    %vm70 = vcmask 1041408
    %v71 = vrot.slane %v22, 6
    %v72 = vrot.slane %v23, 6
    %v73 = vsel %vm70, %v71, %v72
    %v74 = vrot.slane %v24, 6
    %v75 = vrot.slane %v25, 6
    %v76 = vsel %vm70, %v74, %v75
    %v77 = vrot.slane %v26, 6
    %v78 = vrot.slane %v27, 6
    %v79 = vsel %vm70, %v77, %v78
    %v80 = vrot.slane %v28, 6
    %v81 = vrot.slane %v29, 6
    %v82 = vsel %vm70, %v80, %v81
    %v83 = vrot.slane %v30, 6
    %v84 = vrot.slane %v31, 6
    %v85 = vsel %vm70, %v83, %v84
    %v86 = vrot.slane %v32, 6
    %v87 = vrot.slane %v33, 6
    %v88 = vsel %vm70, %v86, %v87
    %v89 = vrot.slane %v34, 6
    %v90 = vrot.slane %v35, 6
    %v91 = vsel %vm70, %v89, %v90
    %v92 = vrot.slane %v36, 6
    %v93 = vrot.slane %v37, 6
    %v94 = vsel %vm70, %v92, %v93
    %v119 = vrot.slane %v23, 4
    %v120 = vrot.slane %v25, 4
    %v121 = vrot.slane %v27, 4
    %v122 = vrot.slane %v29, 4
    %v123 = vrot.slane %v31, 4
    %v124 = vrot.slane %v33, 4
    %v125 = vrot.slane %v35, 4
    %v126 = vrot.slane %v37, 4
    %v135 = vrot.slane %v23, 2
    %v136 = vrot.slane %v25, 2
    %v137 = vrot.slane %v27, 2
    %v138 = vrot.slane %v29, 2
    %v139 = vrot.slane %v31, 2
    %v140 = vrot.slane %v33, 2
    %v141 = vrot.slane %v35, 2
    %v142 = vrot.slane %v37, 2
    %vm151 = vcmask 1040384
    %v152 = vsel %vm151, %v46, %v22
    %v153 = vsel %vm151, %v47, %v24
    %v154 = vsel %vm151, %v48, %v26
    %v155 = vsel %vm151, %v49, %v28
    %v156 = vsel %vm151, %v50, %v30
    %v157 = vsel %vm151, %v51, %v32
    %v158 = vsel %vm151, %v52, %v34
    %v159 = vsel %vm151, %v53, %v36
    %v160 = vsel %vm70, %v152, %v71
    %v161 = vsel %vm70, %v153, %v74
    %v162 = vsel %vm70, %v154, %v77
    %v163 = vsel %vm70, %v155, %v80
    %v164 = vsel %vm70, %v156, %v83
    %v165 = vsel %vm70, %v157, %v86
    %v166 = vsel %vm70, %v158, %v89
    %v167 = vsel %vm70, %v159, %v92
    %v168 = vsel %vm70, %v72, %v119
    %v169 = vsel %vm70, %v75, %v120
    %v170 = vsel %vm70, %v78, %v121
    %v171 = vsel %vm70, %v81, %v122
    %v172 = vsel %vm70, %v84, %v123
    %v173 = vsel %vm70, %v87, %v124
    %v174 = vsel %vm70, %v90, %v125
    %v175 = vsel %vm70, %v93, %v126
    %vm176 = vcmask 1042432
    %v177 = vsel %vm176, %v168, %v135
    %v178 = vsel %vm176, %v169, %v136
    %v179 = vsel %vm176, %v170, %v137
    %v180 = vsel %vm176, %v171, %v138
    %v181 = vsel %vm176, %v172, %v139
    %v182 = vsel %vm176, %v173, %v140
    %v183 = vsel %vm176, %v174, %v141
    %v184 = vsel %vm176, %v175, %v142
    %201 = vrot.lane.b32.xlu0 %v160, 126
    %v202 = vpop.permute.xlu0 %201
    %203 = vrot.lane.b32.xlu0 %v73, 126
    %v204 = vpop.permute.xlu0 %203
    %205 = vrot.lane.b32.xlu0 %v177, 126
    %v206 = vpop.permute.xlu0 %205
    %207 = vrot.lane.b32.xlu0 %v161, 126
    %v208 = vpop.permute.xlu0 %207
    %209 = vrot.lane.b32.xlu0 %v76, 126
    %v210 = vpop.permute.xlu0 %209
    %211 = vrot.lane.b32.xlu0 %v178, 126
    %v212 = vpop.permute.xlu0 %211
    %213 = vrot.lane.b32.xlu0 %v162, 126
    %v214 = vpop.permute.xlu0 %213
    %215 = vrot.lane.b32.xlu0 %v79, 126
    %v216 = vpop.permute.xlu0 %215
    %217 = vrot.lane.b32.xlu0 %v179, 126
    %v218 = vpop.permute.xlu0 %217
    %219 = vrot.lane.b32.xlu0 %v163, 126
    %v220 = vpop.permute.xlu0 %219
    %221 = vrot.lane.b32.xlu0 %v82, 126
    %v222 = vpop.permute.xlu0 %221
    %223 = vrot.lane.b32.xlu0 %v180, 126
    %v224 = vpop.permute.xlu0 %223
    %225 = vrot.lane.b32.xlu0 %v164, 126
    %v226 = vpop.permute.xlu0 %225
    %227 = vrot.lane.b32.xlu0 %v85, 126
    %v228 = vpop.permute.xlu0 %227
    %229 = vrot.lane.b32.xlu0 %v181, 126
    %v230 = vpop.permute.xlu0 %229
    %231 = vrot.lane.b32.xlu0 %v165, 126
    %v232 = vpop.permute.xlu0 %231
    %233 = vrot.lane.b32.xlu0 %v88, 126
    %v234 = vpop.permute.xlu0 %233
    %235 = vrot.lane.b32.xlu0 %v182, 126
    %v236 = vpop.permute.xlu0 %235
    %237 = vrot.lane.b32.xlu0 %v166, 126
    %v238 = vpop.permute.xlu0 %237
    %239 = vrot.lane.b32.xlu0 %v91, 126
    %v240 = vpop.permute.xlu0 %239
    %241 = vrot.lane.b32.xlu0 %v183, 126
    %v242 = vpop.permute.xlu0 %241
    %243 = vrot.lane.b32.xlu0 %v167, 126
    %v244 = vpop.permute.xlu0 %243
    %245 = vrot.lane.b32.xlu0 %v94, 126
    %v246 = vpop.permute.xlu0 %245
    %247 = vrot.lane.b32.xlu0 %v184, 126
    %v248 = vpop.permute.xlu0 %247
    %273 = vrot.lane.b32.xlu0 %v160, 2
    %v274 = vpop.permute.xlu0 %273
    %275 = vrot.lane.b32.xlu0 %v73, 2
    %v276 = vpop.permute.xlu0 %275
    %277 = vrot.lane.b32.xlu0 %v177, 2
    %v278 = vpop.permute.xlu0 %277
    %279 = vrot.lane.b32.xlu0 %v161, 2
    %v280 = vpop.permute.xlu0 %279
    %281 = vrot.lane.b32.xlu0 %v76, 2
    %v282 = vpop.permute.xlu0 %281
    %283 = vrot.lane.b32.xlu0 %v178, 2
    %v284 = vpop.permute.xlu0 %283
    %285 = vrot.lane.b32.xlu0 %v162, 2
    %v286 = vpop.permute.xlu0 %285
    %287 = vrot.lane.b32.xlu0 %v79, 2
    %v288 = vpop.permute.xlu0 %287
    %289 = vrot.lane.b32.xlu0 %v179, 2
    %v290 = vpop.permute.xlu0 %289
    %291 = vrot.lane.b32.xlu0 %v163, 2
    %v292 = vpop.permute.xlu0 %291
    %293 = vrot.lane.b32.xlu0 %v82, 2
    %v294 = vpop.permute.xlu0 %293
    %295 = vrot.lane.b32.xlu0 %v180, 2
    %v296 = vpop.permute.xlu0 %295
    %297 = vrot.lane.b32.xlu0 %v164, 2
    %v298 = vpop.permute.xlu0 %297
    %299 = vrot.lane.b32.xlu0 %v85, 2
    %v300 = vpop.permute.xlu0 %299
    %301 = vrot.lane.b32.xlu0 %v181, 2
    %v302 = vpop.permute.xlu0 %301
    %303 = vrot.lane.b32.xlu0 %v165, 2
    %v304 = vpop.permute.xlu0 %303
    %305 = vrot.lane.b32.xlu0 %v88, 2
    %v306 = vpop.permute.xlu0 %305
    %307 = vrot.lane.b32.xlu0 %v182, 2
    %v308 = vpop.permute.xlu0 %307
    %309 = vrot.lane.b32.xlu0 %v166, 2
    %v310 = vpop.permute.xlu0 %309
    %311 = vrot.lane.b32.xlu0 %v91, 2
    %v312 = vpop.permute.xlu0 %311
    %313 = vrot.lane.b32.xlu0 %v183, 2
    %v314 = vpop.permute.xlu0 %313
    %315 = vrot.lane.b32.xlu0 %v167, 2
    %v316 = vpop.permute.xlu0 %315
    %317 = vrot.lane.b32.xlu0 %v94, 2
    %v318 = vpop.permute.xlu0 %317
    %319 = vrot.lane.b32.xlu0 %v184, 2
    %v320 = vpop.permute.xlu0 %319
    %345 = vrot.lane.b32.xlu0 %v160, 4
    %v346 = vpop.permute.xlu0 %345
    %347 = vrot.lane.b32.xlu0 %v73, 4
    %v348 = vpop.permute.xlu0 %347
    %349 = vrot.lane.b32.xlu0 %v177, 4
    %v350 = vpop.permute.xlu0 %349
    %351 = vrot.lane.b32.xlu0 %v161, 4
    %v352 = vpop.permute.xlu0 %351
    %353 = vrot.lane.b32.xlu0 %v76, 4
    %v354 = vpop.permute.xlu0 %353
    %355 = vrot.lane.b32.xlu0 %v178, 4
    %v356 = vpop.permute.xlu0 %355
    %357 = vrot.lane.b32.xlu0 %v162, 4
    %v358 = vpop.permute.xlu0 %357
    %359 = vrot.lane.b32.xlu0 %v79, 4
    %v360 = vpop.permute.xlu0 %359
    %361 = vrot.lane.b32.xlu0 %v179, 4
    %v362 = vpop.permute.xlu0 %361
    %363 = vrot.lane.b32.xlu0 %v163, 4
    %v364 = vpop.permute.xlu0 %363
    %365 = vrot.lane.b32.xlu0 %v82, 4
    %v366 = vpop.permute.xlu0 %365
    %367 = vrot.lane.b32.xlu0 %v180, 4
    %v368 = vpop.permute.xlu0 %367
    %369 = vrot.lane.b32.xlu0 %v164, 4
    %v370 = vpop.permute.xlu0 %369
    %371 = vrot.lane.b32.xlu0 %v85, 4
    %v372 = vpop.permute.xlu0 %371
    %373 = vrot.lane.b32.xlu0 %v181, 4
    %v374 = vpop.permute.xlu0 %373
    %375 = vrot.lane.b32.xlu0 %v165, 4
    %v376 = vpop.permute.xlu0 %375
    %377 = vrot.lane.b32.xlu0 %v88, 4
    %v378 = vpop.permute.xlu0 %377
    %379 = vrot.lane.b32.xlu0 %v182, 4
    %v380 = vpop.permute.xlu0 %379
    %381 = vrot.lane.b32.xlu0 %v166, 4
    %v382 = vpop.permute.xlu0 %381
    %383 = vrot.lane.b32.xlu0 %v91, 4
    %v384 = vpop.permute.xlu0 %383
    %385 = vrot.lane.b32.xlu0 %v183, 4
    %v386 = vpop.permute.xlu0 %385
    %387 = vrot.lane.b32.xlu0 %v167, 4
    %v388 = vpop.permute.xlu0 %387
    %389 = vrot.lane.b32.xlu0 %v94, 4
    %v390 = vpop.permute.xlu0 %389
    %391 = vrot.lane.b32.xlu0 %v184, 4
    %v392 = vpop.permute.xlu0 %391
    %417 = vrot.lane.b32.xlu0 %v160, 6
    %v418 = vpop.permute.xlu0 %417
    %419 = vrot.lane.b32.xlu0 %v73, 6
    %v420 = vpop.permute.xlu0 %419
    %421 = vrot.lane.b32.xlu0 %v177, 6
    %v422 = vpop.permute.xlu0 %421
    %423 = vrot.lane.b32.xlu0 %v161, 6
    %v424 = vpop.permute.xlu0 %423
    %425 = vrot.lane.b32.xlu0 %v76, 6
    %v426 = vpop.permute.xlu0 %425
    %427 = vrot.lane.b32.xlu0 %v178, 6
    %v428 = vpop.permute.xlu0 %427
    %429 = vrot.lane.b32.xlu0 %v162, 6
    %v430 = vpop.permute.xlu0 %429
    %431 = vrot.lane.b32.xlu0 %v79, 6
    %v432 = vpop.permute.xlu0 %431
    %433 = vrot.lane.b32.xlu0 %v179, 6
    %v434 = vpop.permute.xlu0 %433
    %435 = vrot.lane.b32.xlu0 %v163, 6
    %v436 = vpop.permute.xlu0 %435
    %437 = vrot.lane.b32.xlu0 %v82, 6
    %v438 = vpop.permute.xlu0 %437
    %439 = vrot.lane.b32.xlu0 %v180, 6
    %v440 = vpop.permute.xlu0 %439
    %441 = vrot.lane.b32.xlu0 %v164, 6
    %v442 = vpop.permute.xlu0 %441
    %443 = vrot.lane.b32.xlu0 %v85, 6
    %v444 = vpop.permute.xlu0 %443
    %445 = vrot.lane.b32.xlu0 %v181, 6
    %v446 = vpop.permute.xlu0 %445
    %447 = vrot.lane.b32.xlu0 %v165, 6
    %v448 = vpop.permute.xlu0 %447
    %449 = vrot.lane.b32.xlu0 %v88, 6
    %v450 = vpop.permute.xlu0 %449
    %451 = vrot.lane.b32.xlu0 %v182, 6
    %v452 = vpop.permute.xlu0 %451
    %453 = vrot.lane.b32.xlu0 %v166, 6
    %v454 = vpop.permute.xlu0 %453
    %455 = vrot.lane.b32.xlu0 %v91, 6
    %v456 = vpop.permute.xlu0 %455
    %457 = vrot.lane.b32.xlu0 %v183, 6
    %v458 = vpop.permute.xlu0 %457
    %459 = vrot.lane.b32.xlu0 %v167, 6
    %v460 = vpop.permute.xlu0 %459
    %461 = vrot.lane.b32.xlu0 %v94, 6
    %v462 = vpop.permute.xlu0 %461
    %463 = vrot.lane.b32.xlu0 %v184, 6
    %v464 = vpop.permute.xlu0 %463
    %vm489 = vcmask 7168
    %v490 = vsel %vm489, %v202, %v160
    %v491 = vsel %vm489, %v204, %v73
    %v492 = vsel %vm489, %v206, %v177
    %v493 = vsel %vm489, %v208, %v161
    %v494 = vsel %vm489, %v210, %v76
    %v495 = vsel %vm489, %v212, %v178
    %v496 = vsel %vm489, %v214, %v162
    %v497 = vsel %vm489, %v216, %v79
    %v498 = vsel %vm489, %v218, %v179
    %v499 = vsel %vm489, %v220, %v163
    %v500 = vsel %vm489, %v222, %v82
    %v501 = vsel %vm489, %v224, %v180
    %v502 = vsel %vm489, %v226, %v164
    %v503 = vsel %vm489, %v228, %v85
    %v504 = vsel %vm489, %v230, %v181
    %v505 = vsel %vm489, %v232, %v165
    %v506 = vsel %vm489, %v234, %v88
    %v507 = vsel %vm489, %v236, %v182
    %v508 = vsel %vm489, %v238, %v166
    %v509 = vsel %vm489, %v240, %v91
    %v510 = vsel %vm489, %v242, %v183
    %v511 = vsel %vm489, %v244, %v167
    %v512 = vsel %vm489, %v246, %v94
    %v513 = vsel %vm489, %v248, %v184
    %vm514 = vcmask 15360
    %v515 = vsel %vm514, %v490, %v274
    %v516 = vsel %vm514, %v491, %v276
    %v517 = vsel %vm514, %v492, %v278
    %v518 = vsel %vm514, %v493, %v280
    %v519 = vsel %vm514, %v494, %v282
    %v520 = vsel %vm514, %v495, %v284
    %v521 = vsel %vm514, %v496, %v286
    %v522 = vsel %vm514, %v497, %v288
    %v523 = vsel %vm514, %v498, %v290
    %v524 = vsel %vm514, %v499, %v292
    %v525 = vsel %vm514, %v500, %v294
    %v526 = vsel %vm514, %v501, %v296
    %v527 = vsel %vm514, %v502, %v298
    %v528 = vsel %vm514, %v503, %v300
    %v529 = vsel %vm514, %v504, %v302
    %v530 = vsel %vm514, %v505, %v304
    %v531 = vsel %vm514, %v506, %v306
    %v532 = vsel %vm514, %v507, %v308
    %v533 = vsel %vm514, %v508, %v310
    %v534 = vsel %vm514, %v509, %v312
    %v535 = vsel %vm514, %v510, %v314
    %v536 = vsel %vm514, %v511, %v316
    %v537 = vsel %vm514, %v512, %v318
    %v538 = vsel %vm514, %v513, %v320
    %vm539 = vcmask 146432
    %v540 = vsel %vm539, %v515, %v346
    %v541 = vsel %vm539, %v516, %v348
    %v542 = vsel %vm539, %v517, %v350
    %v543 = vsel %vm539, %v518, %v352
    %v544 = vsel %vm539, %v519, %v354
    %v545 = vsel %vm539, %v520, %v356
    %v546 = vsel %vm539, %v521, %v358
    %v547 = vsel %vm539, %v522, %v360
    %v548 = vsel %vm539, %v523, %v362
    %v549 = vsel %vm539, %v524, %v364
    %v550 = vsel %vm539, %v525, %v366
    %v551 = vsel %vm539, %v526, %v368
    %v552 = vsel %vm539, %v527, %v370
    %v553 = vsel %vm539, %v528, %v372
    %v554 = vsel %vm539, %v529, %v374
    %v555 = vsel %vm539, %v530, %v376
    %v556 = vsel %vm539, %v531, %v378
    %v557 = vsel %vm539, %v532, %v380
    %v558 = vsel %vm539, %v533, %v382
    %v559 = vsel %vm539, %v534, %v384
    %v560 = vsel %vm539, %v535, %v386
    %v561 = vsel %vm539, %v536, %v388
    %v562 = vsel %vm539, %v537, %v390
    %v563 = vsel %vm539, %v538, %v392
    %vm564 = vcmask 154624
    %v565 = vsel %vm564, %v540, %v418
    %v566 = vsel %vm564, %v541, %v420
    %v567 = vsel %vm564, %v542, %v422
    %v568 = vsel %vm564, %v543, %v424
    %v569 = vsel %vm564, %v544, %v426
    %v570 = vsel %vm564, %v545, %v428
    %v571 = vsel %vm564, %v546, %v430
    %v572 = vsel %vm564, %v547, %v432
    %v573 = vsel %vm564, %v548, %v434
    %v574 = vsel %vm564, %v549, %v436
    %v575 = vsel %vm564, %v550, %v438
    %v576 = vsel %vm564, %v551, %v440
    %v577 = vsel %vm564, %v552, %v442
    %v578 = vsel %vm564, %v553, %v444
    %v579 = vsel %vm564, %v554, %v446
    %v580 = vsel %vm564, %v555, %v448
    %v581 = vsel %vm564, %v556, %v450
    %v582 = vsel %vm564, %v557, %v452
    %v583 = vsel %vm564, %v558, %v454
    %v584 = vsel %vm564, %v559, %v456
    %v585 = vsel %vm564, %v560, %v458
    %v586 = vsel %vm564, %v561, %v460
    %v587 = vsel %vm564, %v562, %v462
    %v588 = vsel %vm564, %v563, %v464
    %vm589 = vcmask 162816
    %590 = vst.msk [vmem:[%s1] sm:$0xff] %vm589, %v565
    %591 = vst.msk [vmem:[%s1 + $0x8] sm:$0xff] %vm589, %v566
    %vm592 = vcmask 158720
    %593 = vst.msk [vmem:[%s1 + $0x10] sm:$0xf] %vm592, %v567
    %594 = vst.msk [vmem:[%s1 + $0x18] sm:$0xff] %vm589, %v568
    %595 = vst.msk [vmem:[%s1 + $0x20] sm:$0xff] %vm589, %v569
    %596 = vst.msk [vmem:[%s1 + $0x28] sm:$0xf] %vm592, %v570
    %597 = vst.msk [vmem:[%s1 + $0x30] sm:$0xff] %vm589, %v571
    %598 = vst.msk [vmem:[%s1 + $0x38] sm:$0xff] %vm589, %v572
    %599 = vst.msk [vmem:[%s1 + $0x40] sm:$0xf] %vm592, %v573
    %600 = vst.msk [vmem:[%s1 + $0x48] sm:$0xff] %vm589, %v574
    %601 = vst.msk [vmem:[%s1 + $0x50] sm:$0xff] %vm589, %v575
    %602 = vst.msk [vmem:[%s1 + $0x58] sm:$0xf] %vm592, %v576
    %603 = vst.msk [vmem:[%s1 + $0x60] sm:$0xff] %vm589, %v577
    %604 = vst.msk [vmem:[%s1 + $0x68] sm:$0xff] %vm589, %v578
    %605 = vst.msk [vmem:[%s1 + $0x70] sm:$0xf] %vm592, %v579
    %606 = vst.msk [vmem:[%s1 + $0x78] sm:$0xff] %vm589, %v580
    %607 = vst.msk [vmem:[%s1 + $0x80] sm:$0xff] %vm589, %v581
    %608 = vst.msk [vmem:[%s1 + $0x88] sm:$0xf] %vm592, %v582
    %609 = vst.msk [vmem:[%s1 + $0x90] sm:$0xff] %vm589, %v583
    %610 = vst.msk [vmem:[%s1 + $0x98] sm:$0xff] %vm589, %v584
    %611 = vst.msk [vmem:[%s1 + $0xa0] sm:$0xf] %vm592, %v585
    %612 = vst.msk [vmem:[%s1 + $0xa8] sm:$0xff] %vm589, %v586
    %613 = vst.msk [vmem:[%s1 + $0xb0] sm:$0xff] %vm589, %v587
    %614 = vst.msk [vmem:[%s1 + $0xb8] sm:$0xf] %vm592, %v588
    // Predicated region
    $region10: #{tpu_custom_call.1} parent=1 // pred_check
      _
    $region11: #{tpu_custom_call.1} parent=1 // pred_check_branch
      %616 = sbr.rel (0) target = $region13
    $region12: #{tpu_custom_call.1} parent=1 // pred_region
      _
    $region13: #{tpu_custom_call.1} parent=1 // pred_fallthru
      _
    // Predicated region
    $region14: #{tpu_custom_call.1} parent=1 // pred_check
      _
    $region15: #{tpu_custom_call.1} parent=1 // pred_check_branch
      %618 = sbr.rel (0) target = $region17
    $region16: #{tpu_custom_call.1} parent=1 // pred_region
      _
    $region17: #{tpu_custom_call.1} parent=1 // pred_fallthru
      _
    %619 = vsyncpa [#allocation3], 1

</llo_original>
